<compile_context>
chip_gen: v5e
topology: v5e:2x2
jax: 0.10.0
libtpu: 0.0.40
codegen_flags: <defaults>
</compile_context>

<pallas_src>
import jax
import jax.numpy as jnp
import numpy as np
from jax.experimental import pallas as pl
from jax.experimental.pallas import tpu as pltpu

INPUT_DIM = 11
HIDDEN_DIM = 64
LATENT_DIM = 5
OUT_PAD = 128                 # fused, lane-dense output: [mean(5)|logvar(5)|zeros]
BATCH_TILE = 256              # rows per grid step in the batched path
GRID_THRESHOLD = 2 * BATCH_TILE  # below this, a grid is pure overhead


def encoder_kernel(x_ref, w1_ref, b1_ref, w2_ref, b2_ref, out_ref):
    # fc1 + ReLU (f32 accumulation on the MXU, bias/ReLU on the VPU).
    h = jnp.dot(x_ref[...], w1_ref[...], preferred_element_type=jnp.float32)
    h = jnp.maximum(h + b1_ref[...], 0.0)
    # Fused mean|logvar head: single matmul, single lane-dense (·,128) store.
    out_ref[...] = (jnp.dot(h, w2_ref[...], preferred_element_type=jnp.float32)
                    + b2_ref[...]).astype(out_ref.dtype)


def _encoder_pallas(x, w1_t, b1, w2_pad, b2_pad):
    B = x.shape[0]

    if B < GRID_THRESHOLD:
        # Tiny batch: one full-array VMEM block per operand, no grid.
        vmem = pl.BlockSpec(memory_space=pltpu.MemorySpace.VMEM)
        return pl.pallas_call(
            encoder_kernel,
            out_shape=jax.ShapeDtypeStruct((B, OUT_PAD), jnp.float32),
            in_specs=[vmem] * 5,
            out_specs=vmem,
        )(x, w1_t, b1, w2_pad, b2_pad)

    # Large batch: tile the batch axis so the x DMA overlaps compute and the
    # (parallel) axis can be sharded across v7x's two TensorCores.  pl.cdiv
    # lets Pallas handle the final partial block (no explicit jnp.pad copy).
    num_tiles = pl.cdiv(B, BATCH_TILE)
    return pl.pallas_call(
        encoder_kernel,
        out_shape=jax.ShapeDtypeStruct((B, OUT_PAD), jnp.float32),
        grid=(num_tiles,),
        in_specs=[
            pl.BlockSpec((BATCH_TILE, INPUT_DIM), lambda i: (i, 0)),
            pl.BlockSpec((INPUT_DIM, HIDDEN_DIM), lambda i: (0, 0)),
            pl.BlockSpec((1, HIDDEN_DIM), lambda i: (0, 0)),
            pl.BlockSpec((HIDDEN_DIM, OUT_PAD), lambda i: (0, 0)),
            pl.BlockSpec((1, OUT_PAD), lambda i: (0, 0)),
        ],
        out_specs=pl.BlockSpec((BATCH_TILE, OUT_PAD), lambda i: (i, 0)),
        compiler_params=pltpu.CompilerParams(
            dimension_semantics=("parallel",)),
    )(x, w1_t, b1, w2_pad, b2_pad)


@jax.jit
def encoder_forward(x, packed):
    """x: (B, INPUT_DIM) float32. packed: output of prepare_params()."""
    out = _encoder_pallas(x, packed["w1_t"], packed["b1"],
                          packed["w2_pad"], packed["b2_pad"])
    mean = out[:, :LATENT_DIM]
    logvar = out[:, LATENT_DIM:2 * LATENT_DIM]
    return mean, logvar


def prepare_params(params):
    """One-time packing (hoisted out of the forward path):
    transpose fc1, fuse fc2_mean/fc2_logvar into a single zero-padded,
    lane-dense (64, 128) head with a (1, 128) bias."""
    w1_t = jnp.asarray(params["w1"]).T.astype(jnp.float32)            # (11, 64)
    b1 = jnp.asarray(params["b1"]).reshape(1, HIDDEN_DIM)             # (1, 64)

    w2_pad = jnp.zeros((HIDDEN_DIM, OUT_PAD), jnp.float32)
    w2_pad = w2_pad.at[:, :LATENT_DIM].set(jnp.asarray(params["w_mean"]).T)
    w2_pad = w2_pad.at[:, LATENT_DIM:2 * LATENT_DIM].set(
        jnp.asarray(params["w_logvar"]).T)

    b2_pad = jnp.zeros((1, OUT_PAD), jnp.float32)
    b2_pad = b2_pad.at[0, :LATENT_DIM].set(jnp.asarray(params["b_mean"]))
    b2_pad = b2_pad.at[0, LATENT_DIM:2 * LATENT_DIM].set(
        jnp.asarray(params["b_logvar"]))

    return {"w1_t": w1_t, "b1": b1, "w2_pad": w2_pad, "b2_pad": b2_pad}


def init_params(key):
    """Deterministic init mimicking nn.Linear's U(-1/sqrt(fan_in), +...)."""
    ks = jax.random.split(key, 6)

    def lin(kw, kb, out_f, in_f):
        bound = 1.0 / np.sqrt(in_f)
        w = jax.random.uniform(kw, (out_f, in_f), jnp.float32, -bound, bound)
        b = jax.random.uniform(kb, (out_f,), jnp.float32, -bound, bound)
        return w, b

    w1, b1 = lin(ks[0], ks[1], HIDDEN_DIM, INPUT_DIM)
    w_mean, b_mean = lin(ks[2], ks[3], LATENT_DIM, HIDDEN_DIM)
    w_logvar, b_logvar = lin(ks[4], ks[5], LATENT_DIM, HIDDEN_DIM)
    return {"w1": w1, "b1": b1,
            "w_mean": w_mean, "b_mean": b_mean,
            "w_logvar": w_logvar, "b_logvar": b_logvar}


def reference_forward(x, p):
    h = jnp.maximum(x @ p["w1"].T + p["b1"], 0.0)
    return h @ p["w_mean"].T + p["b_mean"], h @ p["w_logvar"].T + p["b_logvar"]


if __name__ == "__main__":
    key = jax.random.PRNGKey(0)
    k_param, k_small, k_large = jax.random.split(key, 3)
    params = init_params(k_param)
    packed = prepare_params(params)

    # Small batch: single-block path.
    B = 8
    x = jax.random.normal(k_small, (B, INPUT_DIM), dtype=jnp.float32)
    mean, logvar = encoder_forward(x, packed)
    jax.block_until_ready((mean, logvar))
    ref_mean, ref_logvar = reference_forward(x, params)
    assert mean.shape == (B, LATENT_DIM) and logvar.shape == (B, LATENT_DIM)
    assert np.allclose(np.asarray(mean), np.asarray(ref_mean), atol=1e-5)
    assert np.allclose(np.asarray(logvar), np.asarray(ref_logvar), atol=1e-5)

    # Large batch: batch-tiled (parallel) path with a non-multiple tail block.
    B_big = 1000
    x_big = jax.random.normal(k_large, (B_big, INPUT_DIM), dtype=jnp.float32)
    mean_b, logvar_b = encoder_forward(x_big, packed)
    jax.block_until_ready((mean_b, logvar_b))
    ref_mean_b, ref_logvar_b = reference_forward(x_big, params)
    assert mean_b.shape == (B_big, LATENT_DIM)
    assert np.allclose(np.asarray(mean_b), np.asarray(ref_mean_b), atol=1e-5)
    assert np.allclose(np.asarray(logvar_b), np.asarray(ref_logvar_b), atol=1e-5)

    print("KERNEL_OK")
</pallas_src>

<mosaic_0001>
module attributes {stable_mosaic.version = 11 : i64} {
  func.func @encoder_kernel(%arg0: memref<8x11xf32, #tpu.memory_space<vmem>>, %arg1: memref<11x64xf32, #tpu.memory_space<vmem>>, %arg2: memref<1x64xf32, #tpu.memory_space<vmem>>, %arg3: memref<64x128xf32, #tpu.memory_space<vmem>>, %arg4: memref<1x128xf32, #tpu.memory_space<vmem>>, %arg5: memref<8x128xf32, #tpu.memory_space<vmem>>) attributes {dimension_semantics = [], scalar_prefetch = 0 : i64, scratch_operands = 0 : i64, tpu.core_type = #tpu.core_type<tc>} {
    %c0 = arith.constant 0 : index
    %c0_0 = arith.constant 0 : index
    %0 = vector.load %arg0[%c0, %c0_0] : memref<8x11xf32, #tpu.memory_space<vmem>>, vector<8x11xf32>
    %c0_1 = arith.constant 0 : index
    %c0_2 = arith.constant 0 : index
    %1 = vector.load %arg1[%c0_1, %c0_2] : memref<11x64xf32, #tpu.memory_space<vmem>>, vector<11x64xf32>
    %cst = arith.constant dense<0.000000e+00> : vector<8x64xf32>
    %2 = tpu.matmul %0, %1, %cst {dimension_numbers = #tpu.dot_dimension_numbers<[1], [0], [0], [1], [0, 0, 1, 1], [], []>} : vector<8x11xf32>, vector<11x64xf32>, vector<8x64xf32> -> vector<8x64xf32>
    %c0_3 = arith.constant 0 : index
    %c0_4 = arith.constant 0 : index
    %3 = vector.load %arg2[%c0_3, %c0_4] : memref<1x64xf32, #tpu.memory_space<vmem>>, vector<1x64xf32>
    %4 = vector.broadcast %3 : vector<1x64xf32> to vector<8x64xf32>
    %5 = arith.addf %2, %4 : vector<8x64xf32>
    %cst_5 = arith.constant 0.000000e+00 : f32
    %6 = vector.broadcast %cst_5 : f32 to vector<8x64xf32>
    %7 = arith.maximumf %5, %6 : vector<8x64xf32>
    %c0_6 = arith.constant 0 : index
    %c0_7 = arith.constant 0 : index
    %8 = vector.load %arg3[%c0_6, %c0_7] : memref<64x128xf32, #tpu.memory_space<vmem>>, vector<64x128xf32>
    %cst_8 = arith.constant dense<0.000000e+00> : vector<8x128xf32>
    %9 = tpu.matmul %7, %8, %cst_8 {dimension_numbers = #tpu.dot_dimension_numbers<[1], [0], [0], [1], [0, 0, 1, 1], [], []>} : vector<8x64xf32>, vector<64x128xf32>, vector<8x128xf32> -> vector<8x128xf32>
    %c0_9 = arith.constant 0 : index
    %c0_10 = arith.constant 0 : index
    %10 = vector.load %arg4[%c0_9, %c0_10] : memref<1x128xf32, #tpu.memory_space<vmem>>, vector<1x128xf32>
    %11 = vector.broadcast %10 : vector<1x128xf32> to vector<8x128xf32>
    %12 = arith.addf %9, %11 : vector<8x128xf32>
    %c0_11 = arith.constant 0 : index
    %c0_12 = arith.constant 0 : index
    %13 = vector.load %arg5[%c0_11, %c0_12] : memref<8x128xf32, #tpu.memory_space<vmem>>, vector<8x128xf32>
    tpu.vector_store %arg5[%c0_11, %c0_12], %12 {strides = array<i32>} : memref<8x128xf32, #tpu.memory_space<vmem>>, vector<8x128xf32>,
    return
  }
}

</mosaic_0001>

<llo_original>
// kernel: encoder_forward.1
$region0: #{encoder_forward.1}
  #allocation0 [shape = 'u32[]', space=smem, size = 0x4, offset = 0x4, fixed_abs, tag = 'smem constant byte address 0x4 - core index']
  #allocation1 [shape = 'u32[72,128]{1,0:T(1,128)}', space=vmem, size = 0x9000, scoped, tag = 'internal scratch']
  %s0 = inlined_call_operand.hbm [shape: f32[8,11], index: 0, kind: input, shape index: {}]
  %s1 = inlined_call_operand.hbm [shape: f32[11,64], index: 1, kind: input, shape index: {}]
  %s2 = inlined_call_operand.hbm [shape: f32[1,64], index: 2, kind: input, shape index: {}]
  %s3 = inlined_call_operand.hbm [shape: f32[64,128], index: 3, kind: input, shape index: {}]
  %s4 = inlined_call_operand.vmem [shape: f32[1,128], index: 4, kind: input, shape index: {}]
  %s5 = inlined_call_operand.vmem [shape: f32[8,128], index: 5, kind: output, shape index: {}]
  %s6 = sld [smem:[#allocation0]]
  $region46: #{encoder_forward.1} parent=0
    _
  %s8 = ssub.s32 1, %s6
  %s9 = scalar_select 0, %s8, %s6
  $region1: #{encoder_forward.1} parent=0
    #allocation2 [shape = 'u8[4096]{0}', space=vmem, size = 0x1000, scoped, tag = 'input window, operand 0, single buffered']
    #allocation3 [shape = 's32[1]{0}', space=sflag, size = 0x4, scoped, tag = 'scoped memory for encoder_forward.1']
    #allocation4 [shape = 'u8[8192]{0}', space=vmem, size = 0x2000, scoped, tag = 'input window, operand 1, single buffered']
    #allocation5 [shape = 's32[1]{0}', space=sflag, size = 0x4, scoped, tag = 'scoped memory for encoder_forward.1']
    #allocation6 [shape = 'u8[512]{0}', space=vmem, size = 0x400, scoped, tag = 'input window, operand 2, single buffered']
    #allocation7 [shape = 'u8[32768]{0}', space=vmem, size = 0x8000, scoped, tag = 'input window, operand 3, single buffered']
    #allocation8 [shape = 's32[1]{0}', space=sflag, size = 0x4, scoped, tag = 'scoped memory for encoder_forward.1']
    %10 = vsyncpa [#allocation3], 0
    %11 = vsyncpa [#allocation5], 0
    %12 = vsyncpa [#allocation8], 0
    // Predicated region
    $region2: #{encoder_forward.1} parent=1 // pred_check
      _
    $region3: #{encoder_forward.1} parent=1 // pred_check_branch
      %14 = sbr.rel (0) target = $region5
    $region4: #{encoder_forward.1} parent=1 // pred_region
      %16 = vsyncadd [#allocation3], 0
      %s18 = sshll.u32 %s0, 4
      %s19 = int_to_ptr.hbm [resolvable:$true] %s18
      %s20 = sshll.u32 [#allocation2], 4
      %s21 = int_to_ptr.vmem [resolvable:$true] %s20
      %23 = dma.hbm_to_vmem [thread:$0]  %s19, 128, %s21, [#allocation3]
    $region5: #{encoder_forward.1} parent=1 // pred_fallthru
      _
    // Predicated region
    $region6: #{encoder_forward.1} parent=1 // pred_check
      _
    $region7: #{encoder_forward.1} parent=1 // pred_check_branch
      %25 = sbr.rel (0) target = $region9
    $region8: #{encoder_forward.1} parent=1 // pred_region
      %27 = vsyncadd [#allocation5], 0
      %s28 = sshll.u32 %s1, 4
      %s29 = int_to_ptr.hbm [resolvable:$true] %s28
      %s30 = sshll.u32 [#allocation4], 4
      %s31 = int_to_ptr.vmem [resolvable:$true] %s30
      %36 = dma.hbm_to_vmem [thread:$0]  %s29, 256, %s31, [#allocation5], 128, 128, 8
    $region9: #{encoder_forward.1} parent=1 // pred_fallthru
      _
    // Predicated region
    $region10: #{encoder_forward.1} parent=1 // pred_check
      _
    $region11: #{encoder_forward.1} parent=1 // pred_check_branch
      %38 = sbr.rel (0) target = $region13
    $region12: #{encoder_forward.1} parent=1 // pred_region
      %40 = vsyncadd [#allocation5], 0
      %s42 = sshll.u32 %s2, 4
      %s43 = int_to_ptr.hbm [resolvable:$true] %s42
      %s44 = sshll.u32 [#allocation6], 4
      %s45 = int_to_ptr.vmem [resolvable:$true] %s44
      %47 = dma.hbm_to_vmem [thread:$0]  %s43, 16, %s45, [#allocation5]
    $region13: #{encoder_forward.1} parent=1 // pred_fallthru
      _
    // Predicated region
    $region14: #{encoder_forward.1} parent=1 // pred_check
      _
    $region15: #{encoder_forward.1} parent=1 // pred_check_branch
      %49 = sbr.rel (0) target = $region17
    $region16: #{encoder_forward.1} parent=1 // pred_region
      %51 = vsyncadd [#allocation8], 0
      %s52 = sshll.u32 %s3, 4
      %s53 = int_to_ptr.hbm [resolvable:$true] %s52
      %s54 = sshll.u32 [#allocation7], 4
      %s55 = int_to_ptr.vmem [resolvable:$true] %s54
      %60 = dma.hbm_to_vmem [thread:$0]  %s53, 1024, %s55, [#allocation8], 128, 128, 8
    $region17: #{encoder_forward.1} parent=1 // pred_fallthru
      _
    // Predicated region
    $region18: #{encoder_forward.1} parent=1 // pred_check
      _
    $region19: #{encoder_forward.1} parent=1 // pred_check_branch
      %62 = sbr.rel (0) target = $region21
    $region20: #{encoder_forward.1} parent=1 // pred_region
      _
    $region21: #{encoder_forward.1} parent=1 // pred_fallthru
      _
    // Predicated region
    $region22: #{encoder_forward.1} parent=1 // pred_check
      _
    $region23: #{encoder_forward.1} parent=1 // pred_check_branch
      %64 = sbr.rel (0) target = $region25
    $region24: #{encoder_forward.1} parent=1 // pred_region
      %66 = dma.done [#allocation3], 128
    $region25: #{encoder_forward.1} parent=1 // pred_fallthru
      _
    // Predicated region
    $region26: #{encoder_forward.1} parent=1 // pred_check
      _
    $region27: #{encoder_forward.1} parent=1 // pred_check_branch
      %68 = sbr.rel (0) target = $region29
    $region28: #{encoder_forward.1} parent=1 // pred_region
      %70 = dma.done [#allocation5], 256
    $region29: #{encoder_forward.1} parent=1 // pred_fallthru
      _
    // Predicated region
    $region30: #{encoder_forward.1} parent=1 // pred_check
      _
    $region31: #{encoder_forward.1} parent=1 // pred_check_branch
      %72 = sbr.rel (0) target = $region33
    $region32: #{encoder_forward.1} parent=1 // pred_region
      %74 = dma.done [#allocation5], 16
    $region33: #{encoder_forward.1} parent=1 // pred_fallthru
      _
    // Predicated region
    $region34: #{encoder_forward.1} parent=1 // pred_check
      _
    $region35: #{encoder_forward.1} parent=1 // pred_check_branch
      %76 = sbr.rel (0) target = $region37
    $region36: #{encoder_forward.1} parent=1 // pred_region
      %78 = dma.done [#allocation8], 1024
    $region37: #{encoder_forward.1} parent=1 // pred_fallthru
      _
    %v79 = vld [vmem:[#allocation2] sm:$0xff]
    %v80 = vld [vmem:[#allocation4] sm:$0xff]
    %v81 = vld [vmem:[#allocation4 + $0x8] sm:$0x7]
    %v82 = vld [vmem:[#allocation6] sm:$0x1]
    %v84 = vperm.slane %v82, 0
    %vm86 = vcmask 89088
    %v88 = vsel %vm86, %v79, 0
    %vm90 = vcmask 1042432
    %v92 = vsel %vm90, %v81, 0
    %94 = vmatpush.msra.mxu0 0.0
    %95 = vmatpush.msra.mxu0 0.0
    %96 = vmatpush.msra.mxu0 0.0
    %97 = vmatpush.msra.mxu0 0.0
    %98 = vmatpush.msra.mxu0 0.0
    %99 = vmatpush.msra.mxu0 0.0
    %100 = vmatpush.msra.mxu0 0.0
    %101 = vmatpush.msra.mxu0 0.0
    %102 = vmatpush.msra.mxu0 0.0
    %103 = vmatpush.msra.mxu0 0.0
    %104 = vmatpush.msra.mxu0 0.0
    %105 = vmatpush.msra.mxu0 0.0
    %106 = vmatpush.msra.mxu0 0.0
    %107 = vmatpush.msra.mxu0 0.0
    %108 = vmatpush.msra.mxu0 %v92
    %109 = vmatpush.msra.mxu0 %v80
    %110 = vmatmul.f32.gmra.mxu0 %v88
    %v111 = vpop.f32.mrf.mxu0
    %v112 = vadd.f32 %v84, %v111
    %113 = vdwg.mxu0
    %v114 = vmax.f32 %v112, 0.0
    %v115 = vld [vmem:[#allocation7] sm:$0xff]
    %v116 = vld [vmem:[#allocation7 + $0x8] sm:$0xff]
    %v117 = vld [vmem:[#allocation7 + $0x10] sm:$0xff]
    %v118 = vld [vmem:[#allocation7 + $0x18] sm:$0xff]
    %v119 = vld [vmem:[#allocation7 + $0x20] sm:$0xff]
    %v120 = vld [vmem:[#allocation7 + $0x28] sm:$0xff]
    %v121 = vld [vmem:[#allocation7 + $0x30] sm:$0xff]
    %v122 = vld [vmem:[#allocation7 + $0x38] sm:$0xff]
    %v123 = vld [vmem:[%s4] sm:$0x1]
    %v125 = vperm.slane %v123, 0
    %vm127 = vcmask 523264
    %v129 = vsel %vm127, %v114, 0
    %131 = vmatpush.msra.mxu0 0.0
    %132 = vmatpush.msra.mxu0 0.0
    %133 = vmatpush.msra.mxu0 0.0
    %134 = vmatpush.msra.mxu0 0.0
    %135 = vmatpush.msra.mxu0 0.0
    %136 = vmatpush.msra.mxu0 0.0
    %137 = vmatpush.msra.mxu0 0.0
    %138 = vmatpush.msra.mxu0 0.0
    %139 = vmatpush.msra.mxu0 %v122
    %140 = vmatpush.msra.mxu0 %v121
    %141 = vmatpush.msra.mxu0 %v120
    %142 = vmatpush.msra.mxu0 %v119
    %143 = vmatpush.msra.mxu0 %v118
    %144 = vmatpush.msra.mxu0 %v117
    %145 = vmatpush.msra.mxu0 %v116
    %146 = vmatpush.msra.mxu0 %v115
    %147 = vmatmul.f32.gmra.mxu0 %v129
    %v148 = vpop.f32.mrf.mxu0
    %v149 = vadd.f32 %v125, %v148
    %150 = vdwg.mxu0
    %151 = vst [vmem:[%s5] sm:$0xff] %v149
    // Predicated region
    $region38: #{encoder_forward.1} parent=1 // pred_check
      _
    $region39: #{encoder_forward.1} parent=1 // pred_check_branch
      %153 = sbr.rel (0) target = $region41
    $region40: #{encoder_forward.1} parent=1 // pred_region
      _
    $region41: #{encoder_forward.1} parent=1 // pred_fallthru
      _
    // Predicated region
    $region42: #{encoder_forward.1} parent=1 // pred_check
      _
    $region43: #{encoder_forward.1} parent=1 // pred_check_branch
      %155 = sbr.rel (0) target = $region45
    $region44: #{encoder_forward.1} parent=1 // pred_region
      _
    $region45: #{encoder_forward.1} parent=1 // pred_fallthru
      _
    %156 = vsyncpa [#allocation3], 1
    %157 = vsyncpa [#allocation5], 1
    %158 = vsyncpa [#allocation8], 1

</llo_original>
